<compile_context>
chip_gen: v5e
topology: v5e:2x2
jax: 0.10.0
libtpu: 0.0.40
codegen_flags: <defaults>
</compile_context>

<pallas_src>
import functools
import math

import numpy as np
import jax
import jax.numpy as jnp
from jax.experimental import pallas as pl
from jax.experimental.pallas import tpu as pltpu


def _residual_kernel(use_1x1conv, H, x_ref, w1_ref, b1_ref, w2_ref, b2_ref, *rest):
    if use_1x1conv:
        w3_ref, b3_ref, out_ref = rest
    else:
        (out_ref,) = rest

    Nb, _, Lin = x_ref.shape
    Lout = b1_ref.shape[-1]
    M = Nb * H

    # Lane-packed bf16 activations; merge (Nb, H) into the sublane dim (free).
    x = x_ref[...].reshape(M, Lin)

    # Per-image H-border masks (the W borders are folded into the packed weights).
    h = jax.lax.broadcasted_iota(jnp.int32, (M, Lout), 0) % H
    not_top = h != 0
    not_bot = h != H - 1

    def conv3x3(a_bf16, w_ref, b_ref):
        # One MXU issue per conv: the 3 dy taps are lane-concatenated in the weight.
        z = jnp.dot(a_bf16, w_ref[...], preferred_element_type=jnp.float32)
        z0 = z[:, 0 * Lout:1 * Lout]        # dy = 0 tap
        z1 = z[:, 1 * Lout:2 * Lout]        # dy = 1 tap
        z2 = z[:, 2 * Lout:3 * Lout]        # dy = 2 tap
        # y[h] = z0[h-1] + z1[h] + z2[h+1]; sublane shifts ride the XLU, the
        # per-image border rows are masked on the VPU (correct for any number of
        # images stacked along the sublane axis and any grid split).
        y = jnp.where(not_top, pltpu.roll(z0, shift=1, axis=0), 0.0)
        y = y + z1
        y = y + jnp.where(not_bot, pltpu.roll(z2, shift=M - 1, axis=0), 0.0)
        return y + b_ref[...]               # folded BN/conv bias (f32)

    # conv1 (3x3, pad=1) + folded BN1 + ReLU
    y1 = jnp.maximum(conv3x3(x, w1_ref, b1_ref), 0.0)
    # conv2 (3x3, pad=1) + folded BN2
    y2 = conv3x3(y1.astype(jnp.bfloat16), w2_ref, b2_ref)

    # shortcut branch
    if use_1x1conv:
        sc = jnp.dot(x, w3_ref[...], preferred_element_type=jnp.float32) + b3_ref[...]
    else:
        sc = x.astype(jnp.float32)          # identity: Cin == Cout, same lane packing

    # Lane-dense store (last dim is a multiple of 128 by construction).
    out_ref[...] = jnp.maximum(y2 + sc, 0.0).reshape(Nb, H, Lout).astype(out_ref.dtype)


def residual_forward(x_nchw, packed, use_1x1conv, stride=1):
    """x_nchw: (N, Cin, H, W) float -> (N, Cout, H, W) bfloat16."""
    if stride != 1:
        # TODO(synk): stride > 1 conv path not implemented (module default stride=1 is).
        raise NotImplementedError("stride != 1 is not implemented")

    N, Cin, H, W = x_nchw.shape
    P = packed["pack"]                       # images packed per lane row
    Lout = packed["bias1"].shape[-1]
    Cout = Lout // (P * W)
    Lin = P * W * Cin

    # Pad the batch to a multiple of the lane-packing factor.
    Np = -(-N // P) * P
    if Np != N:
        x_nchw = jnp.concatenate(
            [x_nchw, jnp.zeros((Np - N, Cin, H, W), x_nchw.dtype)], axis=0)
    Ng = Np // P

    # NCHW -> lane-packed (Ng, H, P*W*Cin), bf16 across the kernel boundary.
    # TODO(synk): in a full network this packed bf16 layout would be carried
    # between residual blocks instead of re-transposing around each one.
    x = jnp.transpose(x_nchw.reshape(Ng, P, Cin, H, W), (0, 3, 1, 4, 2))
    x = x.reshape(Ng, H, Lin).astype(jnp.bfloat16)

    # Batch Nb lane-rows per grid step so each matmul has M = Nb*H (~256), but
    # keep >= 2 grid steps when possible so both v7x TensorCores get work.
    nb_cap = max(1, 256 // H)
    steps = max(1, -(-Ng // nb_cap))
    if Ng >= 2:
        steps = max(steps, 2)
    Nb = -(-Ng // steps)
    steps = -(-Ng // Nb)
    if steps * Nb != Ng:
        x = jnp.pad(x, ((0, steps * Nb - Ng), (0, 0), (0, 0)))

    kernel = functools.partial(_residual_kernel, use_1x1conv, H)

    # Weights/biases use constant index maps so they stay VMEM-resident.
    # TODO(synk): mark weight specs pipeline_mode=pl.Buffered(1) once Cin/Cout
    # grow enough for the default double-buffering to matter for VMEM.
    in_specs = [
        pl.BlockSpec((Nb, H, Lin), lambda n: (n, 0, 0)),
        pl.BlockSpec((Lin, 3 * Lout), lambda n: (0, 0)),
        pl.BlockSpec((1, Lout), lambda n: (0, 0)),
        pl.BlockSpec((Lout, 3 * Lout), lambda n: (0, 0)),
        pl.BlockSpec((1, Lout), lambda n: (0, 0)),
    ]
    args = [x, packed["W1"], packed["bias1"], packed["W2"], packed["bias2"]]
    if use_1x1conv:
        in_specs += [pl.BlockSpec((Lin, Lout), lambda n: (0, 0)),
                     pl.BlockSpec((1, Lout), lambda n: (0, 0))]
        args += [packed["W3"], packed["bias3"]]

    out = pl.pallas_call(
        kernel,
        out_shape=jax.ShapeDtypeStruct((steps * Nb, H, Lout), jnp.bfloat16),
        grid_spec=pltpu.PrefetchScalarGridSpec(
            num_scalar_prefetch=0,
            grid=(steps,),
            in_specs=in_specs,
            out_specs=pl.BlockSpec((Nb, H, Lout), lambda n: (n, 0, 0)),
        ),
        compiler_params=pltpu.CompilerParams(dimension_semantics=("parallel",)),
    )(*args)

    # Unpack back to NCHW for the caller (demo boundary only; see TODO above).
    out = out[:Ng].reshape(Ng, H, P, W, Cout)
    out = jnp.transpose(out, (0, 2, 4, 1, 3)).reshape(Np, Cout, H, W)
    return out[:N]


def make_params(key, Cin, Cout, use_1x1conv):
    """Deterministic synthetic params; conv bias + eval-mode BN folded to (scale, bias)."""
    ks = jax.random.split(key, 16)
    eps = 1e-5

    def bn_fold(kw, kb, kg, kbe, km, kv, cin):
        w = 0.1 * jax.random.normal(kw, (3, 3, cin, Cout), jnp.float32)
        bconv = 0.1 * jax.random.normal(kb, (Cout,), jnp.float32)
        gamma = 1.0 + 0.1 * jax.random.normal(kg, (Cout,), jnp.float32)
        beta = 0.1 * jax.random.normal(kbe, (Cout,), jnp.float32)
        mean = 0.1 * jax.random.normal(km, (Cout,), jnp.float32)
        var = 1.0 + 0.1 * jnp.abs(jax.random.normal(kv, (Cout,), jnp.float32))
        scale = gamma / jnp.sqrt(var + eps)
        bias = beta + scale * (bconv - mean)
        return w, scale, bias

    w1, s1, b1 = bn_fold(ks[0], ks[1], ks[2], ks[3], ks[4], ks[5], Cin)
    w2, s2, b2 = bn_fold(ks[6], ks[7], ks[8], ks[9], ks[10], ks[11], Cout)
    p = {"w1": w1, "s1": s1, "b1": b1, "w2": w2, "s2": s2, "b2": b2}
    if use_1x1conv:
        p["w3"] = 0.1 * jax.random.normal(ks[12], (Cin, Cout), jnp.float32)
        p["b3"] = 0.1 * jax.random.normal(ks[13], (Cout,), jnp.float32)
    return p


def pack_factor(W, Cout):
    """Smallest P with P*W*Cout a multiple of 128 lanes (lane-dense output)."""
    return 128 // math.gcd(128, W * Cout)


def pack_params(p, W, use_1x1conv, pack=1):
    """Host-side, one-time packing into the lane-packed kernel layout.

    Lane index = p_img*W*C + w*C + c for P images packed per lane row.  The
    fused 3x3 weight has shape (P*W*Cin, 3*P*W*Cout): the dx taps and the
    W-direction zero padding are folded into each per-image block, the P images
    are block-diagonal, and the three dy taps are lane-concatenated so each conv
    is a single MXU matmul.  BN scale folded into the bf16 weights, biases f32.
    """
    P = pack
    w1 = np.asarray(p["w1"]); s1 = np.asarray(p["s1"]); b1 = np.asarray(p["b1"])
    w2 = np.asarray(p["w2"]); s2 = np.asarray(p["s2"]); b2 = np.asarray(p["b2"])
    Cin, Cout = w1.shape[2], w1.shape[3]
    eyeP = np.eye(P, dtype=np.float32)

    def pack3x3(w, scale, cin):
        wf = (w * scale).astype(np.float32)               # fold eval-mode BN scale
        B = np.zeros((3, W * cin, W * Cout), np.float32)
        for dy in range(3):
            for dx in range(3):
                for wo in range(W):                        # output column
                    wi = wo + dx - 1                       # input column (pad=1)
                    if 0 <= wi < W:
                        B[dy, wi * cin:(wi + 1) * cin,
                              wo * Cout:(wo + 1) * Cout] = wf[dy, dx]
        fused = np.concatenate([np.kron(eyeP, B[dy]) for dy in range(3)], axis=-1)
        return jnp.asarray(fused, jnp.bfloat16)

    def pack_bias(b):
        return jnp.asarray(np.tile(b, P * W).reshape(1, P * W * Cout), jnp.float32)

    packed = {
        "pack": P,
        "W1": pack3x3(w1, s1, Cin), "bias1": pack_bias(b1),
        "W2": pack3x3(w2, s2, Cout), "bias2": pack_bias(b2),
    }
    if use_1x1conv:
        w3 = np.asarray(p["w3"]); b3 = np.asarray(p["b3"])
        packed["W3"] = jnp.asarray(
            np.kron(np.eye(P * W, dtype=np.float32), w3), jnp.bfloat16)
        packed["bias3"] = pack_bias(b3)
    return packed


def residual_reference(x_nchw, p, use_1x1conv):
    """Pure-JAX f32 reference (same folded params) for correctness checking."""
    dn = ("NHWC", "HWIO", "NHWC")
    x = jnp.transpose(x_nchw, (0, 2, 3, 1))
    y = jax.lax.conv_general_dilated(x, p["w1"], (1, 1), "SAME", dimension_numbers=dn)
    y = jnp.maximum(y * p["s1"] + p["b1"], 0.0)
    y = jax.lax.conv_general_dilated(y, p["w2"], (1, 1), "SAME", dimension_numbers=dn)
    y = y * p["s2"] + p["b2"]
    if use_1x1conv:
        sc = jnp.einsum("nhwc,co->nhwo", x, p["w3"]) + p["b3"]
    else:
        sc = x
    out = jnp.maximum(y + sc, 0.0)
    return jnp.transpose(out, (0, 3, 1, 2))


if __name__ == "__main__":
    key = jax.random.PRNGKey(0)
    k_x1, k_p1, k_x2, k_p2 = jax.random.split(key, 4)

    # bf16 activations/weights on the MXU path + bf16 output -> loosened
    # tolerance vs the pure-f32 reference (documented precision loss).
    TOL = 3e-2

    # Case 1: projection shortcut (use_1x1conv=True), Cin != Cout
    N, Cin, Cout, H, W = 2, 4, 8, 16, 16
    x1 = jax.random.normal(k_x1, (N, Cin, H, W), jnp.float32)
    p1 = make_params(k_p1, Cin, Cout, use_1x1conv=True)
    pk1 = pack_params(p1, W, use_1x1conv=True, pack=pack_factor(W, Cout))
    out1 = jax.block_until_ready(residual_forward(x1, pk1, use_1x1conv=True))
    ref1 = residual_reference(x1, p1, use_1x1conv=True)
    assert out1.shape == (N, Cout, H, W)
    assert jnp.allclose(out1.astype(jnp.float32), ref1, atol=TOL, rtol=TOL)

    # Case 2: identity shortcut (use_1x1conv=False), Cin == Cout
    # (W*Cout = 64 < 128 -> two images packed per lane row for lane-dense stores)
    Cin2 = Cout2 = 4
    x2 = jax.random.normal(k_x2, (N, Cin2, H, W), jnp.float32)
    p2 = make_params(k_p2, Cin2, Cout2, use_1x1conv=False)
    pk2 = pack_params(p2, W, use_1x1conv=False, pack=pack_factor(W, Cout2))
    out2 = jax.block_until_ready(residual_forward(x2, pk2, use_1x1conv=False))
    ref2 = residual_reference(x2, p2, use_1x1conv=False)
    assert out2.shape == (N, Cout2, H, W)
    assert jnp.allclose(out2.astype(jnp.float32), ref2, atol=TOL, rtol=TOL)

    print("KERNEL_OK")
</pallas_src>

<mosaic_0001>
module attributes {stable_mosaic.version = 11 : i64} {
  func.func @_residual_kernel(%arg0: i32, %arg1: memref<1x16x64xbf16, #tpu.memory_space<vmem>>, %arg2: memref<64x384xbf16, #tpu.memory_space<vmem>>, %arg3: memref<1x128xf32, #tpu.memory_space<vmem>>, %arg4: memref<128x384xbf16, #tpu.memory_space<vmem>>, %arg5: memref<1x128xf32, #tpu.memory_space<vmem>>, %arg6: memref<64x128xbf16, #tpu.memory_space<vmem>>, %arg7: memref<1x128xf32, #tpu.memory_space<vmem>>, %arg8: memref<1x16x128xbf16, #tpu.memory_space<vmem>>) attributes {dimension_semantics = [#tpu.dimension_semantics<parallel>], iteration_bounds = array<i64: 2>, scalar_prefetch = 0 : i64, scratch_operands = 0 : i64, tpu.core_type = #tpu.core_type<tc>, window_params = [{transform_indices = @transform_0, window_bounds = array<i64: 1, 16, 64>}, {pipeline_mode = #tpu.pipeline_mode<synchronous>, transform_indices = @transform_1, window_bounds = array<i64: 64, 384>}, {pipeline_mode = #tpu.pipeline_mode<synchronous>, transform_indices = @transform_2, window_bounds = array<i64: 1, 128>}, {pipeline_mode = #tpu.pipeline_mode<synchronous>, transform_indices = @transform_3, window_bounds = array<i64: 128, 384>}, {pipeline_mode = #tpu.pipeline_mode<synchronous>, transform_indices = @transform_4, window_bounds = array<i64: 1, 128>}, {pipeline_mode = #tpu.pipeline_mode<synchronous>, transform_indices = @transform_5, window_bounds = array<i64: 64, 128>}, {pipeline_mode = #tpu.pipeline_mode<synchronous>, transform_indices = @transform_6, window_bounds = array<i64: 1, 128>}, {transform_indices = @transform_7, window_bounds = array<i64: 1, 16, 128>}]} {
    %c0 = arith.constant 0 : index
    %c0_0 = arith.constant 0 : index
    %c0_1 = arith.constant 0 : index
    %0 = vector.load %arg1[%c0, %c0_0, %c0_1] : memref<1x16x64xbf16, #tpu.memory_space<vmem>>, vector<1x16x64xbf16>
    %1 = vector.shape_cast %0 : vector<1x16x64xbf16> to vector<16x64xbf16>
    %2 = tpu.iota {dimensions = array<i32: 0>} : vector<16x128xi32>
    %c16_i32 = arith.constant 16 : i32
    %c0_i32 = arith.constant 0 : i32
    %3 = arith.cmpi eq, %c16_i32, %c0_i32 : i32
    %c1_i32 = arith.constant 1 : i32
    %4 = arith.select %3, %c1_i32, %c16_i32 : i32
    %5 = vector.broadcast %4 : i32 to vector<16x128xi32>
    %6 = arith.remsi %2, %5 : vector<16x128xi32>
    %c0_i32_2 = arith.constant 0 : i32
    %7 = vector.broadcast %c0_i32_2 : i32 to vector<16x128xi32>
    %8 = arith.cmpi ne, %6, %7 : vector<16x128xi32>
    %c0_i32_3 = arith.constant 0 : i32
    %9 = vector.broadcast %c0_i32_3 : i32 to vector<16x128xi32>
    %10 = arith.cmpi slt, %6, %9 : vector<16x128xi32>
    %c0_i32_4 = arith.constant 0 : i32
    %11 = arith.cmpi slt, %4, %c0_i32_4 : i32
    %12 = vector.broadcast %11 : i1 to vector<16x128xi1>
    %13 = vector.broadcast %12 : vector<16x128xi1> to vector<16x128xi1>
    %14 = arith.xori %10, %13 : vector<16x128xi1>
    %15 = arith.andi %14, %8 : vector<16x128xi1>
    %16 = vector.broadcast %4 : i32 to vector<16x128xi32>
    %17 = arith.addi %6, %16 : vector<16x128xi32>
    %18 = arith.select %15, %17, %6 : vector<16x128xi1>, vector<16x128xi32>
    %c0_i32_5 = arith.constant 0 : i32
    %19 = vector.broadcast %c0_i32_5 : i32 to vector<16x128xi32>
    %20 = arith.cmpi ne, %18, %19 : vector<16x128xi32>
    %c15_i32 = arith.constant 15 : i32
    %21 = vector.broadcast %c15_i32 : i32 to vector<16x128xi32>
    %22 = arith.cmpi ne, %18, %21 : vector<16x128xi32>
    %c0_6 = arith.constant 0 : index
    %c0_7 = arith.constant 0 : index
    %23 = vector.load %arg2[%c0_6, %c0_7] : memref<64x384xbf16, #tpu.memory_space<vmem>>, vector<64x384xbf16>
    %cst = arith.constant dense<0.000000e+00> : vector<16x384xf32>
    %24 = tpu.matmul %1, %23, %cst {dimension_numbers = #tpu.dot_dimension_numbers<[1], [0], [0], [1], [0, 0, 1, 1], [], []>} : vector<16x64xbf16>, vector<64x384xbf16>, vector<16x384xf32> -> vector<16x384xf32>
    %25 = vector.extract_strided_slice %24 {offsets = [0, 0], sizes = [16, 128], strides = [1, 1]} : vector<16x384xf32> to vector<16x128xf32>
    %26 = vector.extract_strided_slice %24 {offsets = [0, 128], sizes = [16, 128], strides = [1, 1]} : vector<16x384xf32> to vector<16x128xf32>
    %27 = vector.extract_strided_slice %24 {offsets = [0, 256], sizes = [16, 128], strides = [1, 1]} : vector<16x384xf32> to vector<16x128xf32>
    %c1_i32_8 = arith.constant 1 : i32
    %28 = tpu.dynamic_rotate %25 by %c1_i32_8 dim 0 : vector<16x128xf32>, i32 -> vector<16x128xf32>
    %cst_9 = arith.constant 0.000000e+00 : f32
    %29 = vector.broadcast %cst_9 : f32 to vector<16x128xf32>
    %30 = arith.select %20, %28, %29 : vector<16x128xi1>, vector<16x128xf32>
    %31 = arith.addf %30, %26 : vector<16x128xf32>
    %c15_i32_10 = arith.constant 15 : i32
    %32 = tpu.dynamic_rotate %27 by %c15_i32_10 dim 0 : vector<16x128xf32>, i32 -> vector<16x128xf32>
    %cst_11 = arith.constant 0.000000e+00 : f32
    %33 = vector.broadcast %cst_11 : f32 to vector<16x128xf32>
    %34 = arith.select %22, %32, %33 : vector<16x128xi1>, vector<16x128xf32>
    %35 = arith.addf %31, %34 : vector<16x128xf32>
    %c0_12 = arith.constant 0 : index
    %c0_13 = arith.constant 0 : index
    %36 = vector.load %arg3[%c0_12, %c0_13] : memref<1x128xf32, #tpu.memory_space<vmem>>, vector<1x128xf32>
    %37 = vector.broadcast %36 : vector<1x128xf32> to vector<16x128xf32>
    %38 = arith.addf %35, %37 : vector<16x128xf32>
    %cst_14 = arith.constant 0.000000e+00 : f32
    %39 = vector.broadcast %cst_14 : f32 to vector<16x128xf32>
    %40 = arith.maximumf %38, %39 : vector<16x128xf32>
    %41 = arith.truncf %40 : vector<16x128xf32> to vector<16x128xbf16>
    %c0_15 = arith.constant 0 : index
    %c0_16 = arith.constant 0 : index
    %42 = vector.load %arg4[%c0_15, %c0_16] : memref<128x384xbf16, #tpu.memory_space<vmem>>, vector<128x384xbf16>
    %cst_17 = arith.constant dense<0.000000e+00> : vector<16x384xf32>
    %43 = tpu.matmul %41, %42, %cst_17 {dimension_numbers = #tpu.dot_dimension_numbers<[1], [0], [0], [1], [0, 0, 1, 1], [], []>} : vector<16x128xbf16>, vector<128x384xbf16>, vector<16x384xf32> -> vector<16x384xf32>
    %44 = vector.extract_strided_slice %43 {offsets = [0, 0], sizes = [16, 128], strides = [1, 1]} : vector<16x384xf32> to vector<16x128xf32>
    %45 = vector.extract_strided_slice %43 {offsets = [0, 128], sizes = [16, 128], strides = [1, 1]} : vector<16x384xf32> to vector<16x128xf32>
    %46 = vector.extract_strided_slice %43 {offsets = [0, 256], sizes = [16, 128], strides = [1, 1]} : vector<16x384xf32> to vector<16x128xf32>
    %c1_i32_18 = arith.constant 1 : i32
    %47 = tpu.dynamic_rotate %44 by %c1_i32_18 dim 0 : vector<16x128xf32>, i32 -> vector<16x128xf32>
    %cst_19 = arith.constant 0.000000e+00 : f32
    %48 = vector.broadcast %cst_19 : f32 to vector<16x128xf32>
    %49 = arith.select %20, %47, %48 : vector<16x128xi1>, vector<16x128xf32>
    %50 = arith.addf %49, %45 : vector<16x128xf32>
    %c15_i32_20 = arith.constant 15 : i32
    %51 = tpu.dynamic_rotate %46 by %c15_i32_20 dim 0 : vector<16x128xf32>, i32 -> vector<16x128xf32>
    %cst_21 = arith.constant 0.000000e+00 : f32
    %52 = vector.broadcast %cst_21 : f32 to vector<16x128xf32>
    %53 = arith.select %22, %51, %52 : vector<16x128xi1>, vector<16x128xf32>
    %54 = arith.addf %50, %53 : vector<16x128xf32>
    %c0_22 = arith.constant 0 : index
    %c0_23 = arith.constant 0 : index
    %55 = vector.load %arg5[%c0_22, %c0_23] : memref<1x128xf32, #tpu.memory_space<vmem>>, vector<1x128xf32>
    %56 = vector.broadcast %55 : vector<1x128xf32> to vector<16x128xf32>
    %57 = arith.addf %54, %56 : vector<16x128xf32>
    %c0_24 = arith.constant 0 : index
    %c0_25 = arith.constant 0 : index
    %58 = vector.load %arg6[%c0_24, %c0_25] : memref<64x128xbf16, #tpu.memory_space<vmem>>, vector<64x128xbf16>
    %cst_26 = arith.constant dense<0.000000e+00> : vector<16x128xf32>
    %59 = tpu.matmul %1, %58, %cst_26 {dimension_numbers = #tpu.dot_dimension_numbers<[1], [0], [0], [1], [0, 0, 1, 1], [], []>} : vector<16x64xbf16>, vector<64x128xbf16>, vector<16x128xf32> -> vector<16x128xf32>
    %c0_27 = arith.constant 0 : index
    %c0_28 = arith.constant 0 : index
    %60 = vector.load %arg7[%c0_27, %c0_28] : memref<1x128xf32, #tpu.memory_space<vmem>>, vector<1x128xf32>
    %61 = vector.broadcast %60 : vector<1x128xf32> to vector<16x128xf32>
    %62 = arith.addf %59, %61 : vector<16x128xf32>
    %63 = arith.addf %57, %62 : vector<16x128xf32>
    %cst_29 = arith.constant 0.000000e+00 : f32
    %64 = vector.broadcast %cst_29 : f32 to vector<16x128xf32>
    %65 = arith.maximumf %63, %64 : vector<16x128xf32>
    %66 = vector.shape_cast %65 : vector<16x128xf32> to vector<1x16x128xf32>
    %67 = arith.truncf %66 : vector<1x16x128xf32> to vector<1x16x128xbf16>
    %c0_30 = arith.constant 0 : index
    %c0_31 = arith.constant 0 : index
    %c0_32 = arith.constant 0 : index
    %68 = vector.load %arg8[%c0_30, %c0_31, %c0_32] : memref<1x16x128xbf16, #tpu.memory_space<vmem>>, vector<1x16x128xbf16>
    tpu.vector_store %arg8[%c0_30, %c0_31, %c0_32], %67 {strides = array<i32>} : memref<1x16x128xbf16, #tpu.memory_space<vmem>>, vector<1x16x128xbf16>,
    return
  }
  func.func @transform_0(%arg0: i32) -> (i32, i32, i32) {
    %c0_i32 = arith.constant 0 : i32
    %c0_i32_0 = arith.constant 0 : i32
    %c0_i32_1 = arith.constant 0 : i32
    return %arg0, %c0_i32, %c0_i32_0 : i32, i32, i32
  }
  func.func @transform_1(%arg0: i32) -> (i32, i32) {
    %c0_i32 = arith.constant 0 : i32
    %c0_i32_0 = arith.constant 0 : i32
    %c0_i32_1 = arith.constant 0 : i32
    return %c0_i32, %c0_i32_0 : i32, i32
  }
  func.func @transform_2(%arg0: i32) -> (i32, i32) {
    %c0_i32 = arith.constant 0 : i32
    %c0_i32_0 = arith.constant 0 : i32
    %c0_i32_1 = arith.constant 0 : i32
    return %c0_i32, %c0_i32_0 : i32, i32
  }
  func.func @transform_3(%arg0: i32) -> (i32, i32) {
    %c0_i32 = arith.constant 0 : i32
    %c0_i32_0 = arith.constant 0 : i32
    %c0_i32_1 = arith.constant 0 : i32
    return %c0_i32, %c0_i32_0 : i32, i32
  }
  func.func @transform_4(%arg0: i32) -> (i32, i32) {
    %c0_i32 = arith.constant 0 : i32
    %c0_i32_0 = arith.constant 0 : i32
    %c0_i32_1 = arith.constant 0 : i32
    return %c0_i32, %c0_i32_0 : i32, i32
  }
  func.func @transform_5(%arg0: i32) -> (i32, i32) {
    %c0_i32 = arith.constant 0 : i32
    %c0_i32_0 = arith.constant 0 : i32
    %c0_i32_1 = arith.constant 0 : i32
    return %c0_i32, %c0_i32_0 : i32, i32
  }
  func.func @transform_6(%arg0: i32) -> (i32, i32) {
    %c0_i32 = arith.constant 0 : i32
    %c0_i32_0 = arith.constant 0 : i32
    %c0_i32_1 = arith.constant 0 : i32
    return %c0_i32, %c0_i32_0 : i32, i32
  }
  func.func @transform_7(%arg0: i32) -> (i32, i32, i32) {
    %c0_i32 = arith.constant 0 : i32
    %c0_i32_0 = arith.constant 0 : i32
    %c0_i32_1 = arith.constant 0 : i32
    return %arg0, %c0_i32, %c0_i32_0 : i32, i32, i32
  }
}

</mosaic_0001>

<llo_original>
// kernel: tpu_custom_call.1
$region0: #{tpu_custom_call.1}
  #allocation0 [shape = 'u32[]', space=smem, size = 0x4, offset = 0x4, fixed_abs, tag = 'smem constant byte address 0x4 - core index']
  #allocation1 [shape = 'u32[72,128]{1,0:T(1,128)}', space=vmem, size = 0x9000, scoped, tag = 'internal scratch']
  %s0 = inlined_call_operand.hbm [shape: bf16[2,16,64], index: 0, kind: input, shape index: {}]
  %s1 = inlined_call_operand.hbm [shape: bf16[64,384], index: 1, kind: input, shape index: {}]
  %s2 = inlined_call_operand.vmem [shape: f32[1,128], index: 2, kind: input, shape index: {}]
  %s3 = inlined_call_operand.hbm [shape: bf16[128,384], index: 3, kind: input, shape index: {}]
  %s4 = inlined_call_operand.vmem [shape: f32[1,128], index: 4, kind: input, shape index: {}]
  %s5 = inlined_call_operand.hbm [shape: bf16[64,128], index: 5, kind: input, shape index: {}]
  %s6 = inlined_call_operand.vmem [shape: f32[1,128], index: 6, kind: input, shape index: {}]
  %s7 = inlined_call_operand.hbm [shape: bf16[2,16,128], index: 7, kind: output, shape index: {}]
  %s8 = sld [smem:[#allocation0]]
  $region77: #{tpu_custom_call.1} parent=0
    _
  %s10 = ssub.s32 1, %s8
  %s11 = scalar_select 0, %s10, %s8
  $region1: #{tpu_custom_call.1} parent=0
    #allocation2 [shape = 'u8[8192]{0}', space=vmem, size = 0x2000, scoped, tag = 'input window, operand 0']
    #allocation3 [shape = 's32[2]{0}', space=sflag, size = 0x8, scoped, tag = 'scoped memory for tpu_custom_call.1']
    #allocation4 [shape = 's32[2]{0}', space=sflag, size = 0x8, scoped, tag = 'scoped memory for tpu_custom_call.1']
    #allocation5 [shape = 'u8[49152]{0}', space=vmem, size = 0xc000, scoped, tag = 'input window, operand 1, single buffered']
    #allocation6 [shape = 's32[1]{0}', space=sflag, size = 0x4, scoped, tag = 'scoped memory for tpu_custom_call.1']
    #allocation7 [shape = 'u8[98304]{0}', space=vmem, size = 0x18000, scoped, tag = 'input window, operand 3, single buffered']
    #allocation8 [shape = 'u8[16384]{0}', space=vmem, size = 0x4000, scoped, tag = 'input window, operand 5, single buffered']
    #allocation9 [shape = 's32[1]{0}', space=sflag, size = 0x4, scoped, tag = 'scoped memory for tpu_custom_call.1']
    #allocation10 [shape = 'u8[8192]{0}', space=vmem, size = 0x2000, scoped, tag = 'output window, operand 0']
    %12 = vsyncpa [#allocation3], 0
    %s13 = scalar_lea.sflag [#allocation3], 1
    %14 = vsyncpa %s13, 0
    %15 = vsyncpa [#allocation6], 0
    %16 = vsyncpa [#allocation9], 0
    %17 = vsyncpa [#allocation4], 0
    %s18 = scalar_lea.sflag [#allocation4], 1
    %19 = vsyncpa %s18, 0
    loop: start=0, step=1, limit=4
    $region2: #{tpu_custom_call.1} parent=1 // loop_pre_header
      _
    $region3: #{tpu_custom_call.1} parent=1 // loop_header
      %s21 = sphi 0, %s25
      %p22 = scmp.ge.s32.totalorder %s21, 4
      %s31 = sphi 0, %s33
      %s34 = sphi 0, %s31
      %s35 = sphi 0, %s34
      %s51 = sphi 0, %s35
      %s55 = sphi 0, %s55
      %s57 = sphi 0, %s55
      %s58 = sphi 0, %s57
      %s72 = sphi 0, %s58
      %s76 = sphi 0, %s76
      %s78 = sphi 0, %s76
      %s79 = sphi 0, %s78
      %s93 = sphi 0, %s79
      %s97 = sphi 0, %s97
      %s99 = sphi 0, %s97
      %s100 = sphi 0, %s99
      %s114 = sphi 0, %s100
      %s118 = sphi 0, %s118
      %s120 = sphi 0, %s118
      %s121 = sphi 0, %s120
      %s135 = sphi 0, %s121
      %s139 = sphi 0, %s139
      %s141 = sphi 0, %s139
      %s142 = sphi 0, %s141
      %s156 = sphi 0, %s142
      %s160 = sphi 0, %s160
      %s162 = sphi 0, %s160
      %s163 = sphi 0, %s162
      %s177 = sphi 0, %s163
      %s183 = sphi 0, %s185
      %s186 = sphi 0, %s183
      %s187 = sphi 0, %s186
      %s203 = sphi 0, %s187
    $region4: #{tpu_custom_call.1} parent=1 // loop_header_branch
      %24 = sbr.rel (%p22) target = $region8
    $region5: #{tpu_custom_call.1} parent=1 // loop_body
      %s26 = ssub.s32 %s21, 1
      %s27 = ssub.s32 %s21, 2
      %s28 = sadd.s32 %s21, 1
      %s29 = ssub.s32 %s21, %s28
      %p30 = scmp.eq.s32.totalorder %s29, 0
      %s32 = sadd.s32 %s31, 1
      %s33 = scalar_select %p30, %s31, %s32
      %p36 = pneg %p30
      %p37 = scmp.eq.s32.totalorder %s21, 1
      %p38 = por %p36, %p37
      %p39 = scmp.ne.s32.totalorder %s31, %s34
      %p40 = scmp.eq.s32.totalorder %s21, 0
      %p41 = por %p39, %p40
      %p42 = scmp.ne.s32.totalorder %s31, %s34
      %p43 = scmp.eq.s32.totalorder %s26, 1
      %p44 = por %p42, %p43
      %p45 = scmp.ne.s32.totalorder %s34, %s35
      %p46 = scmp.eq.s32.totalorder %s26, 0
      %p47 = por %p45, %p46
      %p48 = scmp.ne.s32.totalorder %s34, %s35
      %p49 = scmp.eq.s32.totalorder %s27, 1
      %p50 = por %p48, %p49
      %p52 = scmp.ne.s32.totalorder %s35, %s51
      %p53 = scmp.eq.s32.totalorder %s27, 0
      %p54 = por %p52, %p53
      %s56 = sadd.s32 %s55, 1
      %p59 = scmp.eq.s32.totalorder %s21, 1
      %p60 = scmp.ne.s32.totalorder %s55, %s57
      %p61 = scmp.eq.s32.totalorder %s21, 0
      %p62 = por %p60, %p61
      %p63 = scmp.ne.s32.totalorder %s55, %s57
      %p64 = scmp.eq.s32.totalorder %s26, 1
      %p65 = por %p63, %p64
      %p66 = scmp.ne.s32.totalorder %s57, %s58
      %p67 = scmp.eq.s32.totalorder %s26, 0
      %p68 = por %p66, %p67
      %p69 = scmp.ne.s32.totalorder %s57, %s58
      %p70 = scmp.eq.s32.totalorder %s27, 1
      %p71 = por %p69, %p70
      %p73 = scmp.ne.s32.totalorder %s58, %s72
      %p74 = scmp.eq.s32.totalorder %s27, 0
      %p75 = por %p73, %p74
      %s77 = sadd.s32 %s76, 1
      %p80 = scmp.eq.s32.totalorder %s21, 1
      %p81 = scmp.ne.s32.totalorder %s76, %s78
      %p82 = scmp.eq.s32.totalorder %s21, 0
      %p83 = por %p81, %p82
      %p84 = scmp.ne.s32.totalorder %s76, %s78
      %p85 = scmp.eq.s32.totalorder %s26, 1
      %p86 = por %p84, %p85
      %p87 = scmp.ne.s32.totalorder %s78, %s79
      %p88 = scmp.eq.s32.totalorder %s26, 0
      %p89 = por %p87, %p88
      %p90 = scmp.ne.s32.totalorder %s78, %s79
      %p91 = scmp.eq.s32.totalorder %s27, 1
      %p92 = por %p90, %p91
      %p94 = scmp.ne.s32.totalorder %s79, %s93
      %p95 = scmp.eq.s32.totalorder %s27, 0
      %p96 = por %p94, %p95
      %s98 = sadd.s32 %s97, 1
      %p101 = scmp.eq.s32.totalorder %s21, 1
      %p102 = scmp.ne.s32.totalorder %s97, %s99
      %p103 = scmp.eq.s32.totalorder %s21, 0
      %p104 = por %p102, %p103
      %p105 = scmp.ne.s32.totalorder %s97, %s99
      %p106 = scmp.eq.s32.totalorder %s26, 1
      %p107 = por %p105, %p106
      %p108 = scmp.ne.s32.totalorder %s99, %s100
      %p109 = scmp.eq.s32.totalorder %s26, 0
      %p110 = por %p108, %p109
      %p111 = scmp.ne.s32.totalorder %s99, %s100
      %p112 = scmp.eq.s32.totalorder %s27, 1
      %p113 = por %p111, %p112
      %p115 = scmp.ne.s32.totalorder %s100, %s114
      %p116 = scmp.eq.s32.totalorder %s27, 0
      %p117 = por %p115, %p116
      %s119 = sadd.s32 %s118, 1
      %p122 = scmp.eq.s32.totalorder %s21, 1
      %p123 = scmp.ne.s32.totalorder %s118, %s120
      %p124 = scmp.eq.s32.totalorder %s21, 0
      %p125 = por %p123, %p124
      %p126 = scmp.ne.s32.totalorder %s118, %s120
      %p127 = scmp.eq.s32.totalorder %s26, 1
      %p128 = por %p126, %p127
      %p129 = scmp.ne.s32.totalorder %s120, %s121
      %p130 = scmp.eq.s32.totalorder %s26, 0
      %p131 = por %p129, %p130
      %p132 = scmp.ne.s32.totalorder %s120, %s121
      %p133 = scmp.eq.s32.totalorder %s27, 1
      %p134 = por %p132, %p133
      %p136 = scmp.ne.s32.totalorder %s121, %s135
      %p137 = scmp.eq.s32.totalorder %s27, 0
      %p138 = por %p136, %p137
      %s140 = sadd.s32 %s139, 1
      %p143 = scmp.eq.s32.totalorder %s21, 1
      %p144 = scmp.ne.s32.totalorder %s139, %s141
      %p145 = scmp.eq.s32.totalorder %s21, 0
      %p146 = por %p144, %p145
      %p147 = scmp.ne.s32.totalorder %s139, %s141
      %p148 = scmp.eq.s32.totalorder %s26, 1
      %p149 = por %p147, %p148
      %p150 = scmp.ne.s32.totalorder %s141, %s142
      %p151 = scmp.eq.s32.totalorder %s26, 0
      %p152 = por %p150, %p151
      %p153 = scmp.ne.s32.totalorder %s141, %s142
      %p154 = scmp.eq.s32.totalorder %s27, 1
      %p155 = por %p153, %p154
      %p157 = scmp.ne.s32.totalorder %s142, %s156
      %p158 = scmp.eq.s32.totalorder %s27, 0
      %p159 = por %p157, %p158
      %s161 = sadd.s32 %s160, 1
      %p164 = scmp.eq.s32.totalorder %s21, 1
      %p165 = scmp.ne.s32.totalorder %s160, %s162
      %p166 = scmp.eq.s32.totalorder %s21, 0
      %p167 = por %p165, %p166
      %p168 = scmp.ne.s32.totalorder %s160, %s162
      %p169 = scmp.eq.s32.totalorder %s26, 1
      %p170 = por %p168, %p169
      %p171 = scmp.ne.s32.totalorder %s162, %s163
      %p172 = scmp.eq.s32.totalorder %s26, 0
      %p173 = por %p171, %p172
      %p174 = scmp.ne.s32.totalorder %s162, %s163
      %p175 = scmp.eq.s32.totalorder %s27, 1
      %p176 = por %p174, %p175
      %p178 = scmp.ne.s32.totalorder %s163, %s177
      %p179 = scmp.eq.s32.totalorder %s27, 0
      %p180 = por %p178, %p179
      %s181 = ssub.s32 %s21, %s28
      %p182 = scmp.eq.s32.totalorder %s181, 0
      %s184 = sadd.s32 %s183, 1
      %s185 = scalar_select %p182, %s183, %s184
      %p188 = pneg %p182
      %p189 = scmp.eq.s32.totalorder %s21, 1
      %p190 = por %p188, %p189
      %p191 = scmp.ne.s32.totalorder %s183, %s186
      %p192 = scmp.eq.s32.totalorder %s21, 0
      %p193 = por %p191, %p192
      %p194 = scmp.ne.s32.totalorder %s183, %s186
      %p195 = scmp.eq.s32.totalorder %s26, 1
      %p196 = por %p194, %p195
      %p197 = scmp.ne.s32.totalorder %s186, %s187
      %p198 = scmp.eq.s32.totalorder %s26, 0
      %p199 = por %p197, %p198
      %p200 = scmp.ne.s32.totalorder %s186, %s187
      %p201 = scmp.eq.s32.totalorder %s27, 1
      %p202 = por %p200, %p201
      %p204 = scmp.ne.s32.totalorder %s187, %s203
      %p205 = scmp.eq.s32.totalorder %s27, 0
      %p206 = por %p204, %p205
      %p207 = scmp.le.s32.totalorder 1, %s21
      %p208 = scmp.lt.s32.totalorder %s21, 3
      %p209 = pnand %p207, %p208
      %p210 = pneg %p209
      // Predicated region
      $region9: #{tpu_custom_call.1} parent=5 // pred_check
        _
      $region10: #{tpu_custom_call.1} parent=5 // pred_check_branch
        %212 = sbr.rel (%p209) target = $region12
      $region11: #{tpu_custom_call.1} parent=5 // pred_region
        %s213 = ssub.s32 %s21, 1
        // Predicated region
        $region13: #{tpu_custom_call.1} parent=11 // pred_check
          %p214 = pneg %p68
        $region14: #{tpu_custom_call.1} parent=11 // pred_check_branch
          %216 = sbr.rel (%p214) target = $region16
        $region15: #{tpu_custom_call.1} parent=11 // pred_region
          %218 = vsyncadd [#allocation6], 0
          %s219 = sshll.u32 %s1, 4
          %s220 = int_to_ptr.hbm [resolvable:$true] %s219
          %s221 = sshll.u32 [#allocation5], 4
          %s222 = int_to_ptr.vmem [resolvable:$true] %s221
          %227 = dma.hbm_to_vmem [thread:$0]  %s220, 1536, %s222, [#allocation6], 192, 192, 12
        $region16: #{tpu_custom_call.1} parent=11 // pred_fallthru
          _
        // Predicated region
        $region17: #{tpu_custom_call.1} parent=11 // pred_check
          %p228 = pneg %p89
        $region18: #{tpu_custom_call.1} parent=11 // pred_check_branch
          %230 = sbr.rel (%p228) target = $region20
        $region19: #{tpu_custom_call.1} parent=11 // pred_region
          _
        $region20: #{tpu_custom_call.1} parent=11 // pred_fallthru
          _
        // Predicated region
        $region21: #{tpu_custom_call.1} parent=11 // pred_check
          %p231 = pneg %p110
        $region22: #{tpu_custom_call.1} parent=11 // pred_check_branch
          %233 = sbr.rel (%p231) target = $region24
        $region23: #{tpu_custom_call.1} parent=11 // pred_region
          %235 = vsyncadd [#allocation6], 0
          %s236 = sshll.u32 %s3, 4
          %s237 = int_to_ptr.hbm [resolvable:$true] %s236
          %s238 = sshll.u32 [#allocation7], 4
          %s239 = int_to_ptr.vmem [resolvable:$true] %s238
          %244 = dma.hbm_to_vmem [thread:$0]  %s237, 3072, %s239, [#allocation6], 192, 192, 12
        $region24: #{tpu_custom_call.1} parent=11 // pred_fallthru
          _
        // Predicated region
        $region25: #{tpu_custom_call.1} parent=11 // pred_check
          %p245 = pneg %p131
        $region26: #{tpu_custom_call.1} parent=11 // pred_check_branch
          %247 = sbr.rel (%p245) target = $region28
        $region27: #{tpu_custom_call.1} parent=11 // pred_region
          _
        $region28: #{tpu_custom_call.1} parent=11 // pred_fallthru
          _
        // Predicated region
        $region29: #{tpu_custom_call.1} parent=11 // pred_check
          %p248 = pneg %p152
        $region30: #{tpu_custom_call.1} parent=11 // pred_check_branch
          %250 = sbr.rel (%p248) target = $region32
        $region31: #{tpu_custom_call.1} parent=11 // pred_region
          %252 = vsyncadd [#allocation9], 0
          %s253 = sshll.u32 %s5, 4
          %s254 = int_to_ptr.hbm [resolvable:$true] %s253
          %s255 = sshll.u32 [#allocation8], 4
          %s256 = int_to_ptr.vmem [resolvable:$true] %s255
          %261 = dma.hbm_to_vmem [thread:$0]  %s254, 512, %s256, [#allocation9], 64, 64, 4
        $region32: #{tpu_custom_call.1} parent=11 // pred_fallthru
          _
        // Predicated region
        $region33: #{tpu_custom_call.1} parent=11 // pred_check
          %p262 = pneg %p173
        $region34: #{tpu_custom_call.1} parent=11 // pred_check_branch
          %264 = sbr.rel (%p262) target = $region36
        $region35: #{tpu_custom_call.1} parent=11 // pred_region
          _
        $region36: #{tpu_custom_call.1} parent=11 // pred_fallthru
          _
      $region12: #{tpu_custom_call.1} parent=5 // pred_fallthru
        _
      %p265 = scmp.lt.s32.totalorder %s21, 2
      // Predicated region
      $region37: #{tpu_custom_call.1} parent=5 // pred_check
        %p266 = pneg %p265
      $region38: #{tpu_custom_call.1} parent=5 // pred_check_branch
        %268 = sbr.rel (%p266) target = $region40
      $region39: #{tpu_custom_call.1} parent=5 // pred_region
        // Predicated region
        $region41: #{tpu_custom_call.1} parent=39 // pred_check
          %p269 = pneg %p41
        $region42: #{tpu_custom_call.1} parent=39 // pred_check_branch
          %271 = sbr.rel (%p269) target = $region44
        $region43: #{tpu_custom_call.1} parent=39 // pred_region
          %s272 = sand.u32 %s31, 1
          %s273 = scalar_lea.sflag [#allocation3], %s272
          %s274 = sand.u32 %s31, 1
          %s275 = smul.addr %s274, 8
          %s276 = scalar_lea.vmem [#allocation2], %s275
          %278 = vsyncadd %s273, 0
          %s279 = smul.addr %s21, 2
          %s280 = smul.addr %s279, 4
          %s281 = scalar_lea.hbm %s0, %s280
          %s282 = sshll.u32 %s281, 4
          %s283 = int_to_ptr.hbm [resolvable:$true] %s282
          %s284 = sshll.u32 %s276, 4
          %s285 = int_to_ptr.vmem [resolvable:$true] %s284
          %290 = dma.hbm_to_vmem [thread:$0]  %s283, 128, %s285, %s273, 64, 64, 4
        $region44: #{tpu_custom_call.1} parent=39 // pred_fallthru
          _
      $region40: #{tpu_custom_call.1} parent=5 // pred_fallthru
        _
      %p291 = scmp.le.s32.totalorder 1, %s21
      %p292 = scmp.lt.s32.totalorder %s21, 3
      %p293 = pnand %p291, %p292
      %p294 = pneg %p293
      // Predicated region
      $region45: #{tpu_custom_call.1} parent=5 // pred_check
        _
      $region46: #{tpu_custom_call.1} parent=5 // pred_check_branch
        %296 = sbr.rel (%p293) target = $region48
      $region47: #{tpu_custom_call.1} parent=5 // pred_region
        %s297 = ssub.s32 %s21, 1
        %s298 = sand.u32 %s34, 1
        %s299 = scalar_lea.sflag [#allocation3], %s298
        %s300 = sand.u32 %s34, 1
        %s301 = smul.addr %s300, 8
        %s302 = scalar_lea.vmem [#allocation2], %s301
        // Predicated region
        $region49: #{tpu_custom_call.1} parent=47 // pred_check
          %p303 = pneg %p47
        $region50: #{tpu_custom_call.1} parent=47 // pred_check_branch
          %305 = sbr.rel (%p303) target = $region52
        $region51: #{tpu_custom_call.1} parent=47 // pred_region
          %307 = dma.done %s299, 128
        $region52: #{tpu_custom_call.1} parent=47 // pred_fallthru
          _
        // Predicated region
        $region53: #{tpu_custom_call.1} parent=47 // pred_check
          %p308 = pneg %p68
        $region54: #{tpu_custom_call.1} parent=47 // pred_check_branch
          %310 = sbr.rel (%p308) target = $region56
        $region55: #{tpu_custom_call.1} parent=47 // pred_region
          %312 = dma.done [#allocation6], 1536
        $region56: #{tpu_custom_call.1} parent=47 // pred_fallthru
          _
        // Predicated region
        $region57: #{tpu_custom_call.1} parent=47 // pred_check
          %p313 = pneg %p110
        $region58: #{tpu_custom_call.1} parent=47 // pred_check_branch
          %315 = sbr.rel (%p313) target = $region60
        $region59: #{tpu_custom_call.1} parent=47 // pred_region
          %317 = dma.done [#allocation6], 3072
        $region60: #{tpu_custom_call.1} parent=47 // pred_fallthru
          _
        // Predicated region
        $region61: #{tpu_custom_call.1} parent=47 // pred_check
          %p318 = pneg %p152
        $region62: #{tpu_custom_call.1} parent=47 // pred_check_branch
          %320 = sbr.rel (%p318) target = $region64
        $region63: #{tpu_custom_call.1} parent=47 // pred_region
          %322 = dma.done [#allocation9], 512
        $region64: #{tpu_custom_call.1} parent=47 // pred_fallthru
          _
        %s323 = sand.u32 %s34, 1
        %s324 = scalar_lea.sflag [#allocation3], %s323
        %s325 = sand.u32 %s34, 1
        %s326 = smul.addr %s325, 8
        %s327 = scalar_lea.vmem [#allocation2], %s326
        %p328 = pneg %p47
        %p329 = pneg %p44
        %p330 = pneg %p68
        %p331 = pneg %p65
        %p332 = pneg %p89
        %p333 = pneg %p86
        %p334 = pneg %p110
        %p335 = pneg %p107
        %p336 = pneg %p131
        %p337 = pneg %p128
        %p338 = pneg %p152
        %p339 = pneg %p149
        %p340 = pneg %p173
        %p341 = pneg %p170
        %p342 = pneg %p199
        %p343 = pneg %p196
        %s344 = sand.u32 %s186, 1
        %s345 = scalar_lea.sflag [#allocation4], %s344
        %s346 = sand.u32 %s186, 1
        %s347 = smul.addr %s346, 8
        %s348 = scalar_lea.vmem [#allocation10], %s347
        %v350 = vld [vmem:[%s302] sm:$0xf]
        %v351 = vld [vmem:[%s302 + $0x4] sm:$0xf]
        %v352 = vlaneseq
        %v353 = vshrl.u32 %v352, 7
        %v354 = vadd.s32 %v353, 8
        %vm355 = vcmp.lt.s32.totalorder %v353, 0
        %v356 = vsub.s32 0, %v353
        %v357 = vsel %vm355, %v356, %v353
        %v358 = vshrl.u32 %v357, 4
        %v359 = vand.u32 %v357, 15
        %v360 = vsub.s32 0, %v359
        %v361 = vsel %vm355, %v360, %v359
        %vm362 = vcmp.lt.s32.totalorder %v354, 0
        %v363 = vsub.s32 0, %v354
        %v364 = vsel %vm362, %v363, %v354
        %v365 = vshrl.u32 %v364, 4
        %v366 = vand.u32 %v364, 15
        %v367 = vsub.s32 0, %v366
        %v368 = vsel %vm362, %v367, %v366
        %vm369 = vcmp.ne.s32.totalorder %v361, 0
        %vm370 = vcmp.ne.s32.totalorder %v368, 0
        %vm371 = vcmp.lt.s32.totalorder %v361, 0
        %vm372 = vcmp.lt.s32.totalorder %v368, 0
        %vm373 = vmand %vm371, %vm369
        %vm374 = vmand %vm372, %vm370
        %v375 = vadd.s32 %v361, 16
        %v376 = vadd.s32 %v368, 16
        %v377 = vsel %vm373, %v375, %v361
        %v378 = vsel %vm374, %v376, %v368
        %vm379 = vcmp.ne.s32.totalorder %v377, 0
        %vm380 = vcmp.ne.s32.totalorder %v378, 0
        %vm381 = vcmp.ne.s32.totalorder %v377, 15
        %vm382 = vcmp.ne.s32.totalorder %v378, 15
        %v383 = vld [vmem:[#allocation5] sm:$0xff]
        %v384 = vld [vmem:[#allocation5 + $0x8] sm:$0xf]
        %v385 = vld [vmem:[#allocation5 + $0xc] sm:$0xff]
        %v386 = vld [vmem:[#allocation5 + $0x14] sm:$0xf]
        %v387 = vld [vmem:[#allocation5 + $0x18] sm:$0xff]
        %v388 = vld [vmem:[#allocation5 + $0x20] sm:$0xf]
        %v389 = vld [vmem:[#allocation5 + $0x24] sm:$0xff]
        %v390 = vld [vmem:[#allocation5 + $0x2c] sm:$0xf]
        %v391 = vld [vmem:[#allocation5 + $0x30] sm:$0xff]
        %v392 = vld [vmem:[#allocation5 + $0x38] sm:$0xf]
        %v393 = vld [vmem:[#allocation5 + $0x3c] sm:$0xff]
        %v394 = vld [vmem:[#allocation5 + $0x44] sm:$0xf]
        %v395 = vld [vmem:[#allocation5 + $0x48] sm:$0xff]
        %v396 = vld [vmem:[#allocation5 + $0x50] sm:$0xf]
        %v397 = vld [vmem:[#allocation5 + $0x54] sm:$0xff]
        %v398 = vld [vmem:[#allocation5 + $0x5c] sm:$0xf]
        %v401 = vunpack.c.l.b16 %v350
        %v402 = vunpack.c.l.b16 %v351
        %v403 = vpack.c.b16 %v402, %v401
        %v420 = vunpack.c.l.b16 %v383
        %v421 = vunpack.c.h.b16 %v383
        %v422 = vunpack.c.l.b16 %v384
        %v423 = vunpack.c.l.b16 %v385
        %v424 = vunpack.c.h.b16 %v385
        %v425 = vunpack.c.l.b16 %v386
        %v426 = vunpack.c.l.b16 %v387
        %v427 = vunpack.c.h.b16 %v387
        %v428 = vunpack.c.l.b16 %v388
        %v429 = vunpack.c.l.b16 %v389
        %v430 = vunpack.c.h.b16 %v389
        %v431 = vunpack.c.l.b16 %v390
        %v432 = vunpack.c.l.b16 %v391
        %v433 = vunpack.c.h.b16 %v391
        %v434 = vunpack.c.l.b16 %v392
        %v435 = vunpack.c.l.b16 %v393
        %v436 = vunpack.c.h.b16 %v393
        %v437 = vunpack.c.l.b16 %v394
        %v438 = vunpack.c.l.b16 %v395
        %v439 = vunpack.c.h.b16 %v395
        %v440 = vunpack.c.l.b16 %v396
        %v441 = vunpack.c.l.b16 %v397
        %v442 = vunpack.c.h.b16 %v397
        %v443 = vunpack.c.l.b16 %v398
        %v444 = vpack.c.b16 %v423, %v420
        %v445 = vpack.c.b16 %v424, %v421
        %v446 = vpack.c.b16 %v425, %v422
        %v447 = vpack.c.b16 %v429, %v426
        %v448 = vpack.c.b16 %v430, %v427
        %v449 = vpack.c.b16 %v431, %v428
        %v450 = vpack.c.b16 %v435, %v432
        %v451 = vpack.c.b16 %v436, %v433
        %v452 = vpack.c.b16 %v437, %v434
        %v453 = vpack.c.b16 %v441, %v438
        %v454 = vpack.c.b16 %v442, %v439
        %v455 = vpack.c.b16 %v443, %v440
        %vm468 = vcmask 523264
        %v470 = vsel %vm468, %v403, 0
        %472 = vmatpush.bf16.msra.mxu0 0
        %473 = vmatpush.bf16.msra.mxu0 0
        %474 = vmatpush.bf16.msra.mxu0 0
        %475 = vmatpush.bf16.msra.mxu0 0
        %476 = vmatpush.bf16.msra.mxu0 %v453
        %477 = vmatpush.bf16.msra.mxu0 %v450
        %478 = vmatpush.bf16.msra.mxu0 %v447
        %479 = vmatpush.bf16.msra.mxu0 %v444
        %480 = vmatmul.bf16.gmra.mxu0 %v470
        %v481 = vpop.f32.mrf.mxu0
        %v482 = vadd.f32 0.0, %v481
        %v483 = vpop.f32.mrf.mxu0
        %v484 = vadd.f32 0.0, %v483
        %485 = vdwg.mxu0
        %486 = vmatpush.bf16.msra.mxu0 0
        %487 = vmatpush.bf16.msra.mxu0 0
        %488 = vmatpush.bf16.msra.mxu0 0
        %489 = vmatpush.bf16.msra.mxu0 0
        %490 = vmatpush.bf16.msra.mxu0 %v454
        %491 = vmatpush.bf16.msra.mxu0 %v451
        %492 = vmatpush.bf16.msra.mxu0 %v448
        %493 = vmatpush.bf16.msra.mxu0 %v445
        %494 = vmatmul.bf16.gmra.mxu0 %v470
        %v495 = vpop.f32.mrf.mxu0
        %v496 = vadd.f32 0.0, %v495
        %v497 = vpop.f32.mrf.mxu0
        %v498 = vadd.f32 0.0, %v497
        %499 = vdwg.mxu0
        %500 = vmatpush.bf16.msra.mxu0 0
        %501 = vmatpush.bf16.msra.mxu0 0
        %502 = vmatpush.bf16.msra.mxu0 0
        %503 = vmatpush.bf16.msra.mxu0 0
        %504 = vmatpush.bf16.msra.mxu0 %v455
        %505 = vmatpush.bf16.msra.mxu0 %v452
        %506 = vmatpush.bf16.msra.mxu0 %v449
        %507 = vmatpush.bf16.msra.mxu0 %v446
        %508 = vmatmul.bf16.gmra.mxu0 %v470
        %v509 = vpop.f32.mrf.mxu0
        %v510 = vadd.f32 0.0, %v509
        %v511 = vpop.f32.mrf.mxu0
        %v512 = vadd.f32 0.0, %v511
        %513 = vdwg.mxu0
        %v514 = vrot.slane %v482, 7
        %v515 = vrot.slane %v484, 7
        %vm516 = vcmp.lt.s32.totalorder %v353, 1
        %v517 = vsel %vm516, %v514, %v515
        %v518 = vsel %vm516, %v515, %v514
        %v519 = vsel %vm379, %v518, 0.0
        %v520 = vsel %vm380, %v517, 0.0
        %v521 = vadd.f32 %v519, %v496
        %v522 = vadd.f32 %v520, %v498
        %v523 = vrot.slane %v510, 1
        %v524 = vrot.slane %v512, 1
        %vm525 = vcmp.lt.s32.totalorder %v353, 7
        %v526 = vsel %vm525, %v523, %v524
        %v527 = vsel %vm525, %v524, %v523
        %v528 = vsel %vm381, %v526, 0.0
        %v529 = vsel %vm382, %v527, 0.0
        %v530 = vadd.f32 %v521, %v528
        %v531 = vadd.f32 %v522, %v529
        %v532 = vld [vmem:[%s2] sm:$0x1]
        %v534 = vperm.slane %v532, 0
        %v536 = vadd.f32 %v530, %v534
        %v537 = vadd.f32 %v531, %v534
        %v538 = vmax.f32 %v536, 0.0
        %v539 = vmax.f32 %v537, 0.0
        %v540 = vpack.c.bf16 %v539, %v538
        %v541 = vld [vmem:[#allocation7] sm:$0xff]
        %v542 = vld [vmem:[#allocation7 + $0x8] sm:$0xf]
        %v543 = vld [vmem:[#allocation7 + $0xc] sm:$0xff]
        %v544 = vld [vmem:[#allocation7 + $0x14] sm:$0xf]
        %v545 = vld [vmem:[#allocation7 + $0x18] sm:$0xff]
        %v546 = vld [vmem:[#allocation7 + $0x20] sm:$0xf]
        %v547 = vld [vmem:[#allocation7 + $0x24] sm:$0xff]
        %v548 = vld [vmem:[#allocation7 + $0x2c] sm:$0xf]
        %v549 = vld [vmem:[#allocation7 + $0x30] sm:$0xff]
        %v550 = vld [vmem:[#allocation7 + $0x38] sm:$0xf]
        %v551 = vld [vmem:[#allocation7 + $0x3c] sm:$0xff]
        %v552 = vld [vmem:[#allocation7 + $0x44] sm:$0xf]
        %v553 = vld [vmem:[#allocation7 + $0x48] sm:$0xff]
        %v554 = vld [vmem:[#allocation7 + $0x50] sm:$0xf]
        %v555 = vld [vmem:[#allocation7 + $0x54] sm:$0xff]
        %v556 = vld [vmem:[#allocation7 + $0x5c] sm:$0xf]
        %v557 = vld [vmem:[#allocation7 + $0x60] sm:$0xff]
        %v558 = vld [vmem:[#allocation7 + $0x68] sm:$0xf]
        %v559 = vld [vmem:[#allocation7 + $0x6c] sm:$0xff]
        %v560 = vld [vmem:[#allocation7 + $0x74] sm:$0xf]
        %v561 = vld [vmem:[#allocation7 + $0x78] sm:$0xff]
        %v562 = vld [vmem:[#allocation7 + $0x80] sm:$0xf]
        %v563 = vld [vmem:[#allocation7 + $0x84] sm:$0xff]
        %v564 = vld [vmem:[#allocation7 + $0x8c] sm:$0xf]
        %v565 = vld [vmem:[#allocation7 + $0x90] sm:$0xff]
        %v566 = vld [vmem:[#allocation7 + $0x98] sm:$0xf]
        %v567 = vld [vmem:[#allocation7 + $0x9c] sm:$0xff]
        %v568 = vld [vmem:[#allocation7 + $0xa4] sm:$0xf]
        %v569 = vld [vmem:[#allocation7 + $0xa8] sm:$0xff]
        %v570 = vld [vmem:[#allocation7 + $0xb0] sm:$0xf]
        %v571 = vld [vmem:[#allocation7 + $0xb4] sm:$0xff]
        %v572 = vld [vmem:[#allocation7 + $0xbc] sm:$0xf]
        %v605 = vunpack.c.l.b16 %v541
        %v606 = vunpack.c.h.b16 %v541
        %v607 = vunpack.c.l.b16 %v542
        %v608 = vunpack.c.l.b16 %v543
        %v609 = vunpack.c.h.b16 %v543
        %v610 = vunpack.c.l.b16 %v544
        %v611 = vunpack.c.l.b16 %v545
        %v612 = vunpack.c.h.b16 %v545
        %v613 = vunpack.c.l.b16 %v546
        %v614 = vunpack.c.l.b16 %v547
        %v615 = vunpack.c.h.b16 %v547
        %v616 = vunpack.c.l.b16 %v548
        %v617 = vunpack.c.l.b16 %v549
        %v618 = vunpack.c.h.b16 %v549
        %v619 = vunpack.c.l.b16 %v550
        %v620 = vunpack.c.l.b16 %v551
        %v621 = vunpack.c.h.b16 %v551
        %v622 = vunpack.c.l.b16 %v552
        %v623 = vunpack.c.l.b16 %v553
        %v624 = vunpack.c.h.b16 %v553
        %v625 = vunpack.c.l.b16 %v554
        %v626 = vunpack.c.l.b16 %v555
        %v627 = vunpack.c.h.b16 %v555
        %v628 = vunpack.c.l.b16 %v556
        %v629 = vunpack.c.l.b16 %v557
        %v630 = vunpack.c.h.b16 %v557
        %v631 = vunpack.c.l.b16 %v558
        %v632 = vunpack.c.l.b16 %v559
        %v633 = vunpack.c.h.b16 %v559
        %v634 = vunpack.c.l.b16 %v560
        %v635 = vunpack.c.l.b16 %v561
        %v636 = vunpack.c.h.b16 %v561
        %v637 = vunpack.c.l.b16 %v562
        %v638 = vunpack.c.l.b16 %v563
        %v639 = vunpack.c.h.b16 %v563
        %v640 = vunpack.c.l.b16 %v564
        %v641 = vunpack.c.l.b16 %v565
        %v642 = vunpack.c.h.b16 %v565
        %v643 = vunpack.c.l.b16 %v566
        %v644 = vunpack.c.l.b16 %v567
        %v645 = vunpack.c.h.b16 %v567
        %v646 = vunpack.c.l.b16 %v568
        %v647 = vunpack.c.l.b16 %v569
        %v648 = vunpack.c.h.b16 %v569
        %v649 = vunpack.c.l.b16 %v570
        %v650 = vunpack.c.l.b16 %v571
        %v651 = vunpack.c.h.b16 %v571
        %v652 = vunpack.c.l.b16 %v572
        %v653 = vpack.c.b16 %v608, %v605
        %v654 = vpack.c.b16 %v609, %v606
        %v655 = vpack.c.b16 %v610, %v607
        %v656 = vpack.c.b16 %v614, %v611
        %v657 = vpack.c.b16 %v615, %v612
        %v658 = vpack.c.b16 %v616, %v613
        %v659 = vpack.c.b16 %v620, %v617
        %v660 = vpack.c.b16 %v621, %v618
        %v661 = vpack.c.b16 %v622, %v619
        %v662 = vpack.c.b16 %v626, %v623
        %v663 = vpack.c.b16 %v627, %v624
        %v664 = vpack.c.b16 %v628, %v625
        %v665 = vpack.c.b16 %v632, %v629
        %v666 = vpack.c.b16 %v633, %v630
        %v667 = vpack.c.b16 %v634, %v631
        %v668 = vpack.c.b16 %v638, %v635
        %v669 = vpack.c.b16 %v639, %v636
        %v670 = vpack.c.b16 %v640, %v637
        %v671 = vpack.c.b16 %v644, %v641
        %v672 = vpack.c.b16 %v645, %v642
        %v673 = vpack.c.b16 %v646, %v643
        %v674 = vpack.c.b16 %v650, %v647
        %v675 = vpack.c.b16 %v651, %v648
        %v676 = vpack.c.b16 %v652, %v649
        %701 = vmatpush.bf16.msra.mxu0 %v674
        %702 = vmatpush.bf16.msra.mxu0 %v671
        %703 = vmatpush.bf16.msra.mxu0 %v668
        %704 = vmatpush.bf16.msra.mxu0 %v665
        %705 = vmatpush.bf16.msra.mxu0 %v662
        %706 = vmatpush.bf16.msra.mxu0 %v659
        %707 = vmatpush.bf16.msra.mxu0 %v656
        %708 = vmatpush.bf16.msra.mxu0 %v653
        %709 = vmatmul.bf16.gmra.mxu0 %v540
        %v710 = vpop.f32.mrf.mxu0
        %v711 = vadd.f32 0.0, %v710
        %v712 = vpop.f32.mrf.mxu0
        %v713 = vadd.f32 0.0, %v712
        %714 = vdwg.mxu0
        %715 = vmatpush.bf16.msra.mxu0 %v675
        %716 = vmatpush.bf16.msra.mxu0 %v672
        %717 = vmatpush.bf16.msra.mxu0 %v669
        %718 = vmatpush.bf16.msra.mxu0 %v666
        %719 = vmatpush.bf16.msra.mxu0 %v663
        %720 = vmatpush.bf16.msra.mxu0 %v660
        %721 = vmatpush.bf16.msra.mxu0 %v657
        %722 = vmatpush.bf16.msra.mxu0 %v654
        %723 = vmatmul.bf16.gmra.mxu0 %v540
        %v724 = vpop.f32.mrf.mxu0
        %v725 = vadd.f32 0.0, %v724
        %v726 = vpop.f32.mrf.mxu0
        %v727 = vadd.f32 0.0, %v726
        %728 = vdwg.mxu0
        %729 = vmatpush.bf16.msra.mxu0 %v676
        %730 = vmatpush.bf16.msra.mxu0 %v673
        %731 = vmatpush.bf16.msra.mxu0 %v670
        %732 = vmatpush.bf16.msra.mxu0 %v667
        %733 = vmatpush.bf16.msra.mxu0 %v664
        %734 = vmatpush.bf16.msra.mxu0 %v661
        %735 = vmatpush.bf16.msra.mxu0 %v658
        %736 = vmatpush.bf16.msra.mxu0 %v655
        %737 = vmatmul.bf16.gmra.mxu0 %v540
        %v738 = vpop.f32.mrf.mxu0
        %v739 = vadd.f32 0.0, %v738
        %v740 = vpop.f32.mrf.mxu0
        %v741 = vadd.f32 0.0, %v740
        %742 = vdwg.mxu0
        %v743 = vrot.slane %v711, 7
        %v744 = vrot.slane %v713, 7
        %v745 = vsel %vm516, %v743, %v744
        %v746 = vsel %vm516, %v744, %v743
        %v747 = vsel %vm379, %v746, 0.0
        %v748 = vsel %vm380, %v745, 0.0
        %v749 = vadd.f32 %v747, %v725
        %v750 = vadd.f32 %v748, %v727
        %v751 = vrot.slane %v739, 1
        %v752 = vrot.slane %v741, 1
        %v753 = vsel %vm525, %v751, %v752
        %v754 = vsel %vm525, %v752, %v751
        %v755 = vsel %vm381, %v753, 0.0
        %v756 = vsel %vm382, %v754, 0.0
        %v757 = vadd.f32 %v749, %v755
        %v758 = vadd.f32 %v750, %v756
        %v759 = vld [vmem:[%s4] sm:$0x1]
        %v761 = vperm.slane %v759, 0
        %v763 = vadd.f32 %v757, %v761
        %v764 = vadd.f32 %v758, %v761
        %v765 = vld [vmem:[#allocation8] sm:$0xf]
        %v766 = vld [vmem:[#allocation8 + $0x4] sm:$0xf]
        %v767 = vld [vmem:[#allocation8 + $0x8] sm:$0xf]
        %v768 = vld [vmem:[#allocation8 + $0xc] sm:$0xf]
        %v769 = vld [vmem:[#allocation8 + $0x10] sm:$0xf]
        %v770 = vld [vmem:[#allocation8 + $0x14] sm:$0xf]
        %v771 = vld [vmem:[#allocation8 + $0x18] sm:$0xf]
        %v772 = vld [vmem:[#allocation8 + $0x1c] sm:$0xf]
        %v773 = vld [vmem:[%s6] sm:$0x1]
        %v775 = vperm.slane %v773, 0
        %v785 = vunpack.c.l.b16 %v765
        %v786 = vunpack.c.l.b16 %v766
        %v787 = vunpack.c.l.b16 %v767
        %v788 = vunpack.c.l.b16 %v768
        %v789 = vunpack.c.l.b16 %v769
        %v790 = vunpack.c.l.b16 %v770
        %v791 = vunpack.c.l.b16 %v771
        %v792 = vunpack.c.l.b16 %v772
        %v793 = vpack.c.b16 %v786, %v785
        %v794 = vpack.c.b16 %v788, %v787
        %v795 = vpack.c.b16 %v790, %v789
        %v796 = vpack.c.b16 %v792, %v791
        %801 = vmatpush.bf16.msra.mxu0 0
        %802 = vmatpush.bf16.msra.mxu0 0
        %803 = vmatpush.bf16.msra.mxu0 0
        %804 = vmatpush.bf16.msra.mxu0 0
        %805 = vmatpush.bf16.msra.mxu0 %v796
        %806 = vmatpush.bf16.msra.mxu0 %v795
        %807 = vmatpush.bf16.msra.mxu0 %v794
        %808 = vmatpush.bf16.msra.mxu0 %v793
        %809 = vmatmul.bf16.gmra.mxu0 %v470
        %v810 = vpop.f32.mrf.mxu0
        %v811 = vadd.f32 %v775, %v810
        %v812 = vpop.f32.mrf.mxu0
        %v813 = vadd.f32 %v775, %v812
        %814 = vdwg.mxu0
        %v815 = vadd.f32 %v763, %v811
        %v816 = vadd.f32 %v764, %v813
        %v817 = vmax.f32 %v815, 0.0
        %v818 = vmax.f32 %v816, 0.0
        %v819 = vpack.c.bf16 %v817, %v817
        %v820 = vpack.c.bf16 %v818, %v818
        %821 = vst [vmem:[%s348] sm:$0xf] %v819
        %822 = vst [vmem:[%s348 + $0x4] sm:$0xf] %v820
        %s823 = sand.u32 %s186, 1
        %s824 = scalar_lea.sflag [#allocation4], %s823
        %s825 = sand.u32 %s186, 1
        %s826 = smul.addr %s825, 8
        %s827 = scalar_lea.vmem [#allocation10], %s826
        // Predicated region
        $region65: #{tpu_custom_call.1} parent=47 // pred_check
          %p828 = pneg %p196
        $region66: #{tpu_custom_call.1} parent=47 // pred_check_branch
          %830 = sbr.rel (%p828) target = $region68
        $region67: #{tpu_custom_call.1} parent=47 // pred_region
          %832 = vsyncadd %s824, 0
          %s833 = smul.addr %s26, 2
          %s834 = smul.addr %s833, 4
          %s835 = scalar_lea.hbm %s7, %s834
          %s836 = sshll.u32 %s827, 4
          %s837 = int_to_ptr.vmem [resolvable:$true] %s836
          %s838 = sshll.u32 %s835, 4
          %s839 = int_to_ptr.hbm [resolvable:$true] %s838
          %844 = dma.vmem_to_hbm [thread:$0]  %s837, 128, %s839, %s824, 64, 64, 4
        $region68: #{tpu_custom_call.1} parent=47 // pred_fallthru
          _
      $region48: #{tpu_custom_call.1} parent=5 // pred_fallthru
        _
      %p845 = scmp.le.s32.totalorder 2, %s21
      // Predicated region
      $region69: #{tpu_custom_call.1} parent=5 // pred_check
        %p846 = pneg %p845
      $region70: #{tpu_custom_call.1} parent=5 // pred_check_branch
        %848 = sbr.rel (%p846) target = $region72
      $region71: #{tpu_custom_call.1} parent=5 // pred_region
        %s849 = ssub.s32 %s21, 2
        // Predicated region
        $region73: #{tpu_custom_call.1} parent=71 // pred_check
          %p850 = pneg %p202
        $region74: #{tpu_custom_call.1} parent=71 // pred_check_branch
          %852 = sbr.rel (%p850) target = $region76
        $region75: #{tpu_custom_call.1} parent=71 // pred_region
          %s853 = sand.u32 %s187, 1
          %s854 = scalar_lea.sflag [#allocation4], %s853
          %s855 = sand.u32 %s187, 1
          %s856 = smul.addr %s855, 8
          %s857 = scalar_lea.vmem [#allocation10], %s856
          %859 = dma.done %s854, 128
        $region76: #{tpu_custom_call.1} parent=71 // pred_fallthru
          _
      $region72: #{tpu_custom_call.1} parent=5 // pred_fallthru
        _
    $region6: #{tpu_custom_call.1} parent=1 // loop_footer
      %s25 = sadd.s32 1, %s21
    $region7: #{tpu_custom_call.1} parent=1 // loop_footer_branch
      %20 = sbr.rel target = $region3
    $region8: #{tpu_custom_call.1} parent=1 // loop_exit
      _
    %860 = vsyncpa [#allocation3], 1
    %s861 = scalar_lea.sflag [#allocation3], 1
    %862 = vsyncpa %s861, 1
    %863 = vsyncpa [#allocation6], 1
    %864 = vsyncpa [#allocation9], 1
    %865 = vsyncpa [#allocation4], 1
    %s866 = scalar_lea.sflag [#allocation4], 1
    %867 = vsyncpa %s866, 1

</llo_original>
